<compile_context>
chip_gen: v7x
topology: tpu7x:2x2x1
jax: 0.10.0
libtpu: 0.0.40
codegen_flags: <defaults>
</compile_context>

<pallas_src>
import functools

import jax
import jax.numpy as jnp
import numpy as np
from jax import lax
from jax.experimental import pallas as pl
from jax.experimental.pallas import tpu as pltpu


# --------------------------------------------------------------------------------------
# Kernel
# --------------------------------------------------------------------------------------
def _mcfg_kernel(x_ref, w1t_ref, w2bd_ref, b2_ref, out_ref, acc_ref,
                 *, inv_s, inv_t, eps, kc2):
    step = pl.program_id(0)

    @pl.when(step == 0)
    def _init():
        acc_ref[...] = jnp.zeros_like(acc_ref)

    # Per-tile partial sums on the VPU only (co-issues with the DMA slots); the
    # cross-lane (XLU) reduction is deferred to the final step.
    acc_ref[...] += x_ref[...].astype(jnp.float32)

    @pl.when(step == pl.num_programs(0) - 1)
    def _finalize():
        # AdaptiveAvgPool2d(1): mean over the spatial (lane) axis.
        pooled = jnp.sum(acc_ref[...], axis=2) * inv_s                     # (B, C) f32

        # Both branches fused: fc1_1|fc2_1 concatenated on the output axis, fc1_2|fc2_2
        # block-diagonal. hidden and KC2 are << 128 so each fused dot pads exactly one
        # MXU pass instead of two.
        y1 = jnp.dot(pooled, w1t_ref[...],
                     preferred_element_type=jnp.float32)                   # (B, 2*hidden)
        m1 = jnp.mean(y1, axis=0, keepdims=True)                           # bn*_1 (train)
        v1 = jnp.mean((y1 - m1) ** 2, axis=0, keepdims=True)               # biased var
        y1 = jnp.maximum((y1 - m1) * lax.rsqrt(v1 + eps), 0.0)             # + ReLU

        y2 = jnp.dot(y1, w2bd_ref[...],
                     preferred_element_type=jnp.float32) + b2_ref[...]     # (B, 2*KC2)
        m2 = jnp.mean(y2, axis=0, keepdims=True)                           # bn*_2 (train)
        v2 = jnp.mean((y2 - m2) ** 2, axis=0, keepdims=True)
        z = (y2 - m2) * lax.rsqrt(v2 + eps) * inv_t                        # x / T

        # Per-branch softmax on the fused (B, 2*KC2) array via a lane mask (avoids
        # splitting/re-concatenating sub-tile slices inside the kernel).
        lane = lax.broadcasted_iota(jnp.int32, z.shape, dimension=1)
        first = lane < kc2
        m_a = jnp.max(jnp.where(first, z, -jnp.inf), axis=1, keepdims=True)
        m_b = jnp.max(jnp.where(first, -jnp.inf, z), axis=1, keepdims=True)
        e = jnp.exp(z - jnp.where(first, m_a, m_b))
        s_a = jnp.sum(jnp.where(first, e, 0.0), axis=1, keepdims=True)
        s_b = jnp.sum(jnp.where(first, 0.0, e), axis=1, keepdims=True)
        out_ref[...] = e / jnp.where(first, s_a, s_b)


# --------------------------------------------------------------------------------------
# Wrapper
# --------------------------------------------------------------------------------------
def _pick_tile_s(S, bytes_per_spatial_elem, vmem_budget_bytes):
    """Largest TILE_S that divides S, is a multiple of 128 lanes, and keeps the
    double-buffered x tiles + the f32 accumulator under the VMEM budget."""
    if S % 128 != 0:
        return S  # irregular spatial size: a full-extent block is always legal
    cap = max(128, (vmem_budget_bytes // max(bytes_per_spatial_elem, 1)) // 128 * 128)
    best = None
    t = 128
    limit = min(S, cap)
    while t <= limit:
        if S % t == 0:
            best = t
        t += 128
    return best if best is not None else S


def prepare_mcfg_params(params):
    """One-time fusion / transposition of the routing weights (hoisted out of forward)."""
    hidden = params["w1_2"].shape[1]
    kc2 = params["w1_2"].shape[0]
    w1t = jnp.concatenate([params["w1_1"].T, params["w2_1"].T], axis=1)      # (C, 2*hidden)
    zero = jnp.zeros((hidden, kc2), params["w1_2"].dtype)
    w2bd = jnp.block([[params["w1_2"].T, zero],
                      [zero, params["w2_2"].T]])                             # (2*h, 2*KC2)
    b2 = jnp.concatenate([params["b1_2"], params["b2_2"]]).reshape(1, 2 * kc2)
    return {"w1t": w1t.astype(jnp.float32),
            "w2bd": w2bd.astype(jnp.float32),
            "b2": b2.astype(jnp.float32)}


def mcfg_forward(x, fused, *, T, eps=1e-5, tile_s=None, vmem_budget_bytes=8 << 20):
    """x: NCHW (f32 or bf16). Returns (softmax1, softmax2), each (B, K*C//2), f32."""
    B, C, H, W = x.shape
    assert B > 1, "train-mode BatchNorm requires batch > 1 (PyTorch errors at B=1 too)"
    S = H * W
    kc2_x2 = fused["b2"].shape[1]
    kc2 = kc2_x2 // 2
    two_hidden = fused["w1t"].shape[1]
    itemsize = np.dtype(x.dtype).itemsize

    # Metadata-only reshape (contiguous): no transpose, no padding, no HBM rewrite.
    x3 = x.reshape(B, C, S)

    if tile_s is None:
        tile_s = _pick_tile_s(S, B * C * (2 * itemsize + 4), vmem_budget_bytes)
    assert S % tile_s == 0
    n_steps = S // tile_s

    weight_bytes = 4 * (fused["w1t"].size + fused["w2bd"].size + fused["b2"].size)
    vmem_needed = (2 * B * C * tile_s * itemsize      # double-buffered x tile
                   + B * C * tile_s * 4               # f32 partial-sum accumulator
                   + weight_bytes
                   + B * kc2_x2 * 4)
    vmem_limit = int(max(2 * vmem_needed, 4 << 20))

    kernel = functools.partial(_mcfg_kernel, inv_s=1.0 / S, inv_t=1.0 / float(T),
                               eps=float(eps), kc2=kc2)

    grid_spec = pltpu.PrefetchScalarGridSpec(
        num_scalar_prefetch=0,
        grid=(n_steps,),
        in_specs=[
            pl.BlockSpec((B, C, tile_s), lambda s: (0, 0, s)),      # lane-dense x tiles
            pl.BlockSpec(fused["w1t"].shape, lambda s: (0, 0)),     # resident weights
            pl.BlockSpec(fused["w2bd"].shape, lambda s: (0, 0)),
            pl.BlockSpec(fused["b2"].shape, lambda s: (0, 0)),
        ],
        out_specs=pl.BlockSpec((B, kc2_x2), lambda s: (0, 0)),      # output-resident
        scratch_shapes=[pltpu.VMEM((B, C, tile_s), jnp.float32)],
    )

    cost = pl.CostEstimate(
        flops=int(B * C * S + 2 * B * C * two_hidden + 2 * B * two_hidden * kc2_x2),
        transcendentals=int(B * kc2_x2 + 2 * (two_hidden + kc2_x2)),
        bytes_accessed=int(B * C * S * itemsize + weight_bytes + B * kc2_x2 * 4),
    )

    out = pl.pallas_call(
        kernel,
        out_shape=jax.ShapeDtypeStruct((B, kc2_x2), jnp.float32),
        grid_spec=grid_spec,
        compiler_params=pltpu.CompilerParams(
            dimension_semantics=("arbitrary",),       # spatial reduction axis
            vmem_limit_bytes=vmem_limit,
        ),
        cost_estimate=cost,
    )(x3, fused["w1t"], fused["w2bd"], fused["b2"])

    # Single wide store inside the kernel; split into the two routing tensors here (tiny).
    return out[:, :kc2], out[:, kc2:]


# --------------------------------------------------------------------------------------
# Pure-JAX reference (same math) for self-validation.
# --------------------------------------------------------------------------------------
def reference_forward(x, params, *, T, eps=1e-5):
    pooled = jnp.mean(x.astype(jnp.float32), axis=(2, 3))
    hp = lax.Precision.HIGHEST

    def branch(w1, w2, b2):
        y1 = jnp.dot(pooled, w1.T, precision=hp)
        m1 = jnp.mean(y1, axis=0)
        v1 = jnp.mean((y1 - m1) ** 2, axis=0)
        y1 = jax.nn.relu((y1 - m1) / jnp.sqrt(v1 + eps))
        y2 = jnp.dot(y1, w2.T, precision=hp) + b2
        m2 = jnp.mean(y2, axis=0)
        v2 = jnp.mean((y2 - m2) ** 2, axis=0)
        y2 = (y2 - m2) / jnp.sqrt(v2 + eps)
        return jax.nn.softmax(y2 / T, axis=1)

    return (branch(params["w1_1"], params["w1_2"], params["b1_2"]),
            branch(params["w2_1"], params["w2_2"], params["b2_2"]))


# --------------------------------------------------------------------------------------
if __name__ == "__main__":
    def make_params(key, C, K):
        # Kaiming-normal fan_in/relu init for the 1x1 convs, biases=0, BN gamma=1/beta=0.
        hidden = C if C != 3 else K
        kc2 = int(K * C * 0.5)
        k11, k12, k21, k22 = jax.random.split(key, 4)
        return {
            "w1_1": jax.random.normal(k11, (hidden, C), jnp.float32) * np.sqrt(2.0 / C),
            "w1_2": jax.random.normal(k12, (kc2, hidden), jnp.float32) * np.sqrt(2.0 / hidden),
            "b1_2": jnp.zeros((kc2,), jnp.float32),
            "w2_1": jax.random.normal(k21, (hidden, C), jnp.float32) * np.sqrt(2.0 / C),
            "w2_2": jax.random.normal(k22, (kc2, hidden), jnp.float32) * np.sqrt(2.0 / hidden),
            "b2_2": jnp.zeros((kc2,), jnp.float32),
        }

    key = jax.random.PRNGKey(0)

    # ---- test 1: the spec's small shape (B=2, C=4, 16x16, K=3, T=34) ----------------
    B, C, H, W, K, T = 2, 4, 16, 16, 3, 34.0
    kp, kx, key = jax.random.split(key, 3)
    params = make_params(kp, C, K)
    fused = prepare_mcfg_params(params)
    x = jax.random.normal(kx, (B, C, H, W), jnp.float32)

    fwd = jax.jit(functools.partial(mcfg_forward, T=T))
    o1, o2 = jax.block_until_ready(fwd(x, fused))
    r1, r2 = reference_forward(x, params, T=T)
    kc2 = int(K * C * 0.5)
    assert o1.shape == (B, kc2) and o2.shape == (B, kc2)
    np.testing.assert_allclose(np.asarray(o1), np.asarray(r1), rtol=1e-3, atol=1e-5)
    np.testing.assert_allclose(np.asarray(o2), np.asarray(r2), rtol=1e-3, atol=1e-5)
    np.testing.assert_allclose(np.asarray(o1).sum(axis=1), np.ones(B), rtol=1e-5, atol=1e-5)
    np.testing.assert_allclose(np.asarray(o2).sum(axis=1), np.ones(B), rtol=1e-5, atol=1e-5)

    # ---- test 2: multi-step spatial grid (forces the partial-sum accumulator path) --
    B2, C2, H2, W2, K2, T2 = 4, 8, 32, 32, 4, 31.0
    kp2, kx2, key = jax.random.split(key, 3)
    params2 = make_params(kp2, C2, K2)
    fused2 = prepare_mcfg_params(params2)
    x2 = jax.random.normal(kx2, (B2, C2, H2, W2), jnp.float32)
    o1b, o2b = jax.block_until_ready(
        mcfg_forward(x2, fused2, T=T2, tile_s=256))   # 1024 / 256 = 4 grid steps
    r1b, r2b = reference_forward(x2, params2, T=T2)
    np.testing.assert_allclose(np.asarray(o1b), np.asarray(r1b), rtol=1e-3, atol=1e-5)
    np.testing.assert_allclose(np.asarray(o2b), np.asarray(r2b), rtol=1e-3, atol=1e-5)

    # ---- test 3: bf16 activations (pool accumulates in f32 inside the kernel) -------
    xb = x2.astype(jnp.bfloat16)
    o1c, o2c = jax.block_until_ready(mcfg_forward(xb, fused2, T=T2, tile_s=512))
    r1c, r2c = reference_forward(xb, params2, T=T2)
    np.testing.assert_allclose(np.asarray(o1c), np.asarray(r1c), rtol=5e-3, atol=5e-4)
    np.testing.assert_allclose(np.asarray(o2c), np.asarray(r2c), rtol=5e-3, atol=5e-4)

    print("KERNEL_OK")
</pallas_src>

<mosaic_0001>
module attributes {stable_mosaic.version = 11 : i64} {
  func.func @_mcfg_kernel(%arg0: i32, %arg1: memref<2x4x256xf32, #tpu.memory_space<vmem>>, %arg2: memref<4x8xf32, #tpu.memory_space<vmem>>, %arg3: memref<8x12xf32, #tpu.memory_space<vmem>>, %arg4: memref<1x12xf32, #tpu.memory_space<vmem>>, %arg5: memref<2x12xf32, #tpu.memory_space<vmem>>, %arg6: memref<2x4x256xf32, #tpu.memory_space<vmem>>) attributes {dimension_semantics = [#tpu.dimension_semantics<arbitrary>], iteration_bounds = array<i64: 1>, scalar_prefetch = 0 : i64, scratch_operands = 1 : i64, tpu.core_type = #tpu.core_type<tc>, window_params = [{transform_indices = @transform_0, window_bounds = array<i64: 2, 4, 256>}, {pipeline_mode = #tpu.pipeline_mode<synchronous>, transform_indices = @transform_1, window_bounds = array<i64: 4, 8>}, {pipeline_mode = #tpu.pipeline_mode<synchronous>, transform_indices = @transform_2, window_bounds = array<i64: 8, 12>}, {pipeline_mode = #tpu.pipeline_mode<synchronous>, transform_indices = @transform_3, window_bounds = array<i64: 1, 12>}, {pipeline_mode = #tpu.pipeline_mode<synchronous>, transform_indices = @transform_4, window_bounds = array<i64: 2, 12>}]} {
    %c0_i32 = arith.constant 0 : i32
    %0 = arith.cmpi eq, %arg0, %c0_i32 : i32
    %1 = arith.extui %0 : i1 to i32
    %c0_i32_0 = arith.constant 0 : i32
    %2 = arith.cmpi ne, %1, %c0_i32_0 : i32
    scf.if %2 {
      %cst = arith.constant 0.000000e+00 : f32
      %10 = vector.broadcast %cst : f32 to vector<2x4x256xf32>
      %c0_11 = arith.constant 0 : index
      %c0_12 = arith.constant 0 : index
      %c0_13 = arith.constant 0 : index
      %11 = vector.load %arg6[%c0_11, %c0_12, %c0_13] : memref<2x4x256xf32, #tpu.memory_space<vmem>>, vector<2x4x256xf32>
      tpu.vector_store %arg6[%c0_11, %c0_12, %c0_13], %10 {strides = array<i32>} : memref<2x4x256xf32, #tpu.memory_space<vmem>>, vector<2x4x256xf32>,
    } else {
    }
    %c0 = arith.constant 0 : index
    %c0_1 = arith.constant 0 : index
    %c0_2 = arith.constant 0 : index
    %3 = vector.load %arg6[%c0, %c0_1, %c0_2] : memref<2x4x256xf32, #tpu.memory_space<vmem>>, vector<2x4x256xf32>
    %c0_3 = arith.constant 0 : index
    %c0_4 = arith.constant 0 : index
    %c0_5 = arith.constant 0 : index
    %4 = vector.load %arg1[%c0_3, %c0_4, %c0_5] : memref<2x4x256xf32, #tpu.memory_space<vmem>>, vector<2x4x256xf32>
    %5 = arith.addf %3, %4 : vector<2x4x256xf32>
    %c0_6 = arith.constant 0 : index
    %c0_7 = arith.constant 0 : index
    %c0_8 = arith.constant 0 : index
    %6 = vector.load %arg6[%c0_6, %c0_7, %c0_8] : memref<2x4x256xf32, #tpu.memory_space<vmem>>, vector<2x4x256xf32>
    tpu.vector_store %arg6[%c0_6, %c0_7, %c0_8], %5 {strides = array<i32>} : memref<2x4x256xf32, #tpu.memory_space<vmem>>, vector<2x4x256xf32>,
    %c0_i32_9 = arith.constant 0 : i32
    %7 = arith.cmpi eq, %arg0, %c0_i32_9 : i32
    %8 = arith.extui %7 : i1 to i32
    %c0_i32_10 = arith.constant 0 : i32
    %9 = arith.cmpi ne, %8, %c0_i32_10 : i32
    scf.if %9 {
      %c0_11 = arith.constant 0 : index
      %c0_12 = arith.constant 0 : index
      %c0_13 = arith.constant 0 : index
      %10 = vector.load %arg6[%c0_11, %c0_12, %c0_13] : memref<2x4x256xf32, #tpu.memory_space<vmem>>, vector<2x4x256xf32>
      %cst = arith.constant dense<0.000000e+00> : vector<2x4xf32>
      %11 = vector.multi_reduction <add>, %10, %cst [2] : vector<2x4x256xf32> to vector<2x4xf32>
      %cst_14 = arith.constant 3.906250e-03 : f32
      %12 = vector.broadcast %cst_14 : f32 to vector<2x4xf32>
      %13 = arith.mulf %11, %12 : vector<2x4xf32>
      %c0_15 = arith.constant 0 : index
      %c0_16 = arith.constant 0 : index
      %14 = vector.load %arg2[%c0_15, %c0_16] : memref<4x8xf32, #tpu.memory_space<vmem>>, vector<4x8xf32>
      %cst_17 = arith.constant dense<0.000000e+00> : vector<2x8xf32>
      %15 = tpu.matmul %13, %14, %cst_17 {dimension_numbers = #tpu.dot_dimension_numbers<[1], [0], [0], [1], [0, 0, 1, 1], [], []>} : vector<2x4xf32>, vector<4x8xf32>, vector<2x8xf32> -> vector<2x8xf32>
      %cst_18 = arith.constant dense<0.000000e+00> : vector<8xf32>
      %16 = vector.multi_reduction <add>, %15, %cst_18 [0] : vector<2x8xf32> to vector<8xf32>
      %17 = vector.shape_cast %16 : vector<8xf32> to vector<1x8xf32>
      %cst_19 = arith.constant 2.000000e+00 : f32
      %18 = vector.broadcast %cst_19 : f32 to vector<1x8xf32>
      %19 = arith.divf %17, %18 : vector<1x8xf32>
      %20 = vector.broadcast %19 : vector<1x8xf32> to vector<2x8xf32>
      %21 = arith.subf %15, %20 : vector<2x8xf32>
      %22 = arith.mulf %21, %21 : vector<2x8xf32>
      %cst_20 = arith.constant dense<0.000000e+00> : vector<8xf32>
      %23 = vector.multi_reduction <add>, %22, %cst_20 [0] : vector<2x8xf32> to vector<8xf32>
      %24 = vector.shape_cast %23 : vector<8xf32> to vector<1x8xf32>
      %cst_21 = arith.constant 2.000000e+00 : f32
      %25 = vector.broadcast %cst_21 : f32 to vector<1x8xf32>
      %26 = arith.divf %24, %25 : vector<1x8xf32>
      %27 = vector.broadcast %19 : vector<1x8xf32> to vector<2x8xf32>
      %28 = arith.subf %15, %27 : vector<2x8xf32>
      %cst_22 = arith.constant 9.99999974E-6 : f32
      %29 = vector.broadcast %cst_22 : f32 to vector<1x8xf32>
      %30 = arith.addf %26, %29 : vector<1x8xf32>
      %31 = math.rsqrt %30 : vector<1x8xf32>
      %32 = vector.broadcast %31 : vector<1x8xf32> to vector<2x8xf32>
      %33 = arith.mulf %28, %32 : vector<2x8xf32>
      %cst_23 = arith.constant 0.000000e+00 : f32
      %34 = vector.broadcast %cst_23 : f32 to vector<2x8xf32>
      %35 = arith.maximumf %33, %34 : vector<2x8xf32>
      %c0_24 = arith.constant 0 : index
      %c0_25 = arith.constant 0 : index
      %36 = vector.load %arg3[%c0_24, %c0_25] : memref<8x12xf32, #tpu.memory_space<vmem>>, vector<8x12xf32>
      %cst_26 = arith.constant dense<0.000000e+00> : vector<2x12xf32>
      %37 = tpu.matmul %35, %36, %cst_26 {dimension_numbers = #tpu.dot_dimension_numbers<[1], [0], [0], [1], [0, 0, 1, 1], [], []>} : vector<2x8xf32>, vector<8x12xf32>, vector<2x12xf32> -> vector<2x12xf32>
      %c0_27 = arith.constant 0 : index
      %c0_28 = arith.constant 0 : index
      %38 = vector.load %arg4[%c0_27, %c0_28] : memref<1x12xf32, #tpu.memory_space<vmem>>, vector<1x12xf32>
      %39 = vector.broadcast %38 : vector<1x12xf32> to vector<2x12xf32>
      %40 = arith.addf %37, %39 : vector<2x12xf32>
      %cst_29 = arith.constant dense<0.000000e+00> : vector<12xf32>
      %41 = vector.multi_reduction <add>, %40, %cst_29 [0] : vector<2x12xf32> to vector<12xf32>
      %42 = vector.shape_cast %41 : vector<12xf32> to vector<1x12xf32>
      %cst_30 = arith.constant 2.000000e+00 : f32
      %43 = vector.broadcast %cst_30 : f32 to vector<1x12xf32>
      %44 = arith.divf %42, %43 : vector<1x12xf32>
      %45 = vector.broadcast %44 : vector<1x12xf32> to vector<2x12xf32>
      %46 = arith.subf %40, %45 : vector<2x12xf32>
      %47 = arith.mulf %46, %46 : vector<2x12xf32>
      %cst_31 = arith.constant dense<0.000000e+00> : vector<12xf32>
      %48 = vector.multi_reduction <add>, %47, %cst_31 [0] : vector<2x12xf32> to vector<12xf32>
      %49 = vector.shape_cast %48 : vector<12xf32> to vector<1x12xf32>
      %cst_32 = arith.constant 2.000000e+00 : f32
      %50 = vector.broadcast %cst_32 : f32 to vector<1x12xf32>
      %51 = arith.divf %49, %50 : vector<1x12xf32>
      %52 = vector.broadcast %44 : vector<1x12xf32> to vector<2x12xf32>
      %53 = arith.subf %40, %52 : vector<2x12xf32>
      %cst_33 = arith.constant 9.99999974E-6 : f32
      %54 = vector.broadcast %cst_33 : f32 to vector<1x12xf32>
      %55 = arith.addf %51, %54 : vector<1x12xf32>
      %56 = math.rsqrt %55 : vector<1x12xf32>
      %57 = vector.broadcast %56 : vector<1x12xf32> to vector<2x12xf32>
      %58 = arith.mulf %53, %57 : vector<2x12xf32>
      %cst_34 = arith.constant 0.0294117648 : f32
      %59 = vector.broadcast %cst_34 : f32 to vector<2x12xf32>
      %60 = arith.mulf %58, %59 : vector<2x12xf32>
      %61 = tpu.iota {dimensions = array<i32: 1>} : vector<2x12xi32>
      %c6_i32 = arith.constant 6 : i32
      %62 = vector.broadcast %c6_i32 : i32 to vector<2x12xi32>
      %63 = arith.cmpi slt, %61, %62 : vector<2x12xi32>
      %cst_35 = arith.constant 0xFF800000 : f32
      %64 = vector.broadcast %cst_35 : f32 to vector<2x12xf32>
      %65 = arith.select %63, %60, %64 : vector<2x12xi1>, vector<2x12xf32>
      %cst_36 = arith.constant dense<0xFF800000> : vector<2xf32>
      %66 = vector.multi_reduction <maximumf>, %65, %cst_36 [1] : vector<2x12xf32> to vector<2xf32>
      %67 = vector.shape_cast %66 : vector<2xf32> to vector<2x1xf32>
      %cst_37 = arith.constant 0xFF800000 : f32
      %68 = vector.broadcast %cst_37 : f32 to vector<2x12xf32>
      %69 = arith.select %63, %68, %60 : vector<2x12xi1>, vector<2x12xf32>
      %cst_38 = arith.constant dense<0xFF800000> : vector<2xf32>
      %70 = vector.multi_reduction <maximumf>, %69, %cst_38 [1] : vector<2x12xf32> to vector<2xf32>
      %71 = vector.shape_cast %70 : vector<2xf32> to vector<2x1xf32>
      %72 = vector.shape_cast %67 : vector<2x1xf32> to vector<2x1xf32>
      %73 = vector.broadcast %72 : vector<2x1xf32> to vector<2x12xf32>
      %74 = vector.shape_cast %71 : vector<2x1xf32> to vector<2x1xf32>
      %75 = vector.broadcast %74 : vector<2x1xf32> to vector<2x12xf32>
      %76 = arith.select %63, %73, %75 : vector<2x12xi1>, vector<2x12xf32>
      %77 = arith.subf %60, %76 : vector<2x12xf32>
      %78 = math.exp %77 : vector<2x12xf32>
      %cst_39 = arith.constant 0.000000e+00 : f32
      %79 = vector.broadcast %cst_39 : f32 to vector<2x12xf32>
      %80 = arith.select %63, %78, %79 : vector<2x12xi1>, vector<2x12xf32>
      %cst_40 = arith.constant dense<0.000000e+00> : vector<2xf32>
      %81 = vector.multi_reduction <add>, %80, %cst_40 [1] : vector<2x12xf32> to vector<2xf32>
      %82 = vector.shape_cast %81 : vector<2xf32> to vector<2x1xf32>
      %cst_41 = arith.constant 0.000000e+00 : f32
      %83 = vector.broadcast %cst_41 : f32 to vector<2x12xf32>
      %84 = arith.select %63, %83, %78 : vector<2x12xi1>, vector<2x12xf32>
      %cst_42 = arith.constant dense<0.000000e+00> : vector<2xf32>
      %85 = vector.multi_reduction <add>, %84, %cst_42 [1] : vector<2x12xf32> to vector<2xf32>
      %86 = vector.shape_cast %85 : vector<2xf32> to vector<2x1xf32>
      %87 = vector.shape_cast %82 : vector<2x1xf32> to vector<2x1xf32>
      %88 = vector.broadcast %87 : vector<2x1xf32> to vector<2x12xf32>
      %89 = vector.shape_cast %86 : vector<2x1xf32> to vector<2x1xf32>
      %90 = vector.broadcast %89 : vector<2x1xf32> to vector<2x12xf32>
      %91 = arith.select %63, %88, %90 : vector<2x12xi1>, vector<2x12xf32>
      %92 = arith.divf %78, %91 : vector<2x12xf32>
      %c0_43 = arith.constant 0 : index
      %c0_44 = arith.constant 0 : index
      %93 = vector.load %arg5[%c0_43, %c0_44] : memref<2x12xf32, #tpu.memory_space<vmem>>, vector<2x12xf32>
      tpu.vector_store %arg5[%c0_43, %c0_44], %92 {strides = array<i32>} : memref<2x12xf32, #tpu.memory_space<vmem>>, vector<2x12xf32>,
    } else {
    }
    return
  }
  func.func @transform_0(%arg0: i32) -> (i32, i32, i32) {
    %c0_i32 = arith.constant 0 : i32
    %c0_i32_0 = arith.constant 0 : i32
    %c0_i32_1 = arith.constant 0 : i32
    return %c0_i32, %c0_i32_0, %arg0 : i32, i32, i32
  }
  func.func @transform_1(%arg0: i32) -> (i32, i32) {
    %c0_i32 = arith.constant 0 : i32
    %c0_i32_0 = arith.constant 0 : i32
    %c0_i32_1 = arith.constant 0 : i32
    return %c0_i32, %c0_i32_0 : i32, i32
  }
  func.func @transform_2(%arg0: i32) -> (i32, i32) {
    %c0_i32 = arith.constant 0 : i32
    %c0_i32_0 = arith.constant 0 : i32
    %c0_i32_1 = arith.constant 0 : i32
    return %c0_i32, %c0_i32_0 : i32, i32
  }
  func.func @transform_3(%arg0: i32) -> (i32, i32) {
    %c0_i32 = arith.constant 0 : i32
    %c0_i32_0 = arith.constant 0 : i32
    %c0_i32_1 = arith.constant 0 : i32
    return %c0_i32, %c0_i32_0 : i32, i32
  }
  func.func @transform_4(%arg0: i32) -> (i32, i32) {
    %c0_i32 = arith.constant 0 : i32
    %c0_i32_0 = arith.constant 0 : i32
    %c0_i32_1 = arith.constant 0 : i32
    return %c0_i32, %c0_i32_0 : i32, i32
  }
}

</mosaic_0001>

<llo_original>
// kernel: mcfg_forward.1
$region0: #{mcfg_forward.1}
  #allocation0 [shape = 'u32[]', space=smem, size = 0x4, offset = 0x4, fixed_abs, tag = 'smem constant byte address 0x4 - core index']
  #allocation1 [shape = 'u32[144,128]{1,0:T(1,128)}', space=vmem, size = 0x12000, scoped, tag = 'internal scratch']
  #allocation2 [shape = 'f32[2,4,256]{2,1,0:T(4,128)}', space=vmem, size = 0x2000, scoped, tag = 'scratch operand']
  %s0 = inlined_call_operand.vmem [shape: f32[2,4,256], index: 0, kind: input, shape index: {}]
  %s1 = inlined_call_operand.vmem [shape: f32[4,8], index: 1, kind: input, shape index: {}]
  %s2 = inlined_call_operand.vmem [shape: f32[8,12], index: 2, kind: input, shape index: {}]
  %s3 = inlined_call_operand.vmem [shape: f32[1,12], index: 3, kind: input, shape index: {}]
  %s4 = inlined_call_operand.vmem [shape: f32[2,12], index: 4, kind: output, shape index: {}]
  %s5 = sld [smem:[#allocation0]]
  $region34: #{mcfg_forward.1} parent=0
    _
  %s7 = ssub.s32 1, %s5
  %s8 = scalar_select 0, %s7, %s5
  // Predicated region
  $region2: #{mcfg_forward.1} parent=0 // pred_check
    _
  $region3: #{mcfg_forward.1} parent=0 // pred_check_branch
    %10 = sbr.rel (0) target = $region5
  $region4: #{mcfg_forward.1} parent=0 // pred_region
    _
  $region5: #{mcfg_forward.1} parent=0 // pred_fallthru
    _
  // Predicated region
  $region6: #{mcfg_forward.1} parent=0 // pred_check
    _
  $region7: #{mcfg_forward.1} parent=0 // pred_check_branch
    %12 = sbr.rel (0) target = $region9
  $region8: #{mcfg_forward.1} parent=0 // pred_region
    _
  $region9: #{mcfg_forward.1} parent=0 // pred_fallthru
    _
  // Predicated region
  $region10: #{mcfg_forward.1} parent=0 // pred_check
    _
  $region11: #{mcfg_forward.1} parent=0 // pred_check_branch
    %14 = sbr.rel (0) target = $region13
  $region12: #{mcfg_forward.1} parent=0 // pred_region
    _
  $region13: #{mcfg_forward.1} parent=0 // pred_fallthru
    _
  // Predicated region
  $region14: #{mcfg_forward.1} parent=0 // pred_check
    _
  $region15: #{mcfg_forward.1} parent=0 // pred_check_branch
    %16 = sbr.rel (0) target = $region17
  $region16: #{mcfg_forward.1} parent=0 // pred_region
    _
  $region17: #{mcfg_forward.1} parent=0 // pred_fallthru
    _
  %p17 = scmp.eq.s32.totalorder 0, 0
  // Predicated region
  $region18: #{mcfg_forward.1} parent=0 // pred_check
    %p18 = pneg %p17
  $region19: #{mcfg_forward.1} parent=0 // pred_check_branch
    %20 = sbr.rel (%p18) target = $region21
  $region20: #{mcfg_forward.1} parent=0 // pred_region
    %21 = vst [vmem:[#allocation2] sm:$0xff] 0.0
    %22 = vst [vmem:[#allocation2 + $0x8] sm:$0xff] 0.0
  $region21: #{mcfg_forward.1} parent=0 // pred_fallthru
    _
  %v23 = vld [vmem:[#allocation2] sm:$0xff]
  %v24 = vld [vmem:[#allocation2 + $0x8] sm:$0xff]
  %v25 = vld [vmem:[%s0] sm:$0xff]
  %v26 = vld [vmem:[%s0 + $0x8] sm:$0xff]
  %v27 = vadd.f32 %v23, %v25
  %v28 = vadd.f32 %v24, %v26
  %29 = vst [vmem:[#allocation2] sm:$0xff] %v27
  %30 = vst [vmem:[#allocation2 + $0x8] sm:$0xff] %v28
  // Predicated region
  $region22: #{mcfg_forward.1} parent=0 // pred_check
    %p31 = pneg %p17
  $region23: #{mcfg_forward.1} parent=0 // pred_check_branch
    %33 = sbr.rel (%p31) target = $region25
  $region24: #{mcfg_forward.1} parent=0 // pred_region
    %v34 = vld [vmem:[#allocation2] sm:$0xff]
    %v35 = vld [vmem:[#allocation2 + $0x8] sm:$0xff]
    %v38 = vcombine.high %v34, %v34
    %v39 = vcombine.high %v35, %v35
    %vm42 = vcmask 1043456
    %v43 = vsel %vm42, %v34, 0.0
    %v44 = vsel %vm42, %v38, 0.0
    %v45 = vadd.f32 %v43, %v44
    %46 = vadd.xlane.f32.xlu0 %v45
    %v47 = vpop.xlane.xlu0 %46
    %v48 = vsel %vm42, %v35, 0.0
    %v49 = vsel %vm42, %v39, 0.0
    %v50 = vadd.f32 %v48, %v49
    %51 = vadd.xlane.f32.xlu0 %v50
    %v52 = vpop.xlane.xlu0 %51
    %v53 = vmul.f32 %v47, 0.00390625
    %v54 = vmul.f32 %v52, 0.00390625
    %v55 = vld [vmem:[%s1] sm:$0xf]
    %v58 = vlaneseq
    %v59 = vand.u32 %v58, 127
    %v60 = vlaneseq
    %v61 = vshrl.u32 %v60, 7
    %v62 = vsub.s32 %v59, %v61
    %v63 = vrot.slane %v53, %v62
    %v64 = vlaneseq
    %v65 = vshrl.u32 %v64, 7
    %v66 = vsub.s32 %v59, %v65
    %v67 = vrot.slane %v54, %v66
    %vm68 = vcmask 1041409
    %v69 = vsel %vm68, %v67, %v63
    %vm70 = vcmask 31744
    %v71 = vsel %vm70, %v69, 0
    %v74 = vsel %vm42, %v55, 0
    %76 = vmatprep.subr.mxu0 0.0
    %77 = vmatpush1.msra.mxu0 %v74
    %78 = vmatprep.subr.mxu0 0.0
    %79 = vmatpush1.msra.mxu0 0.0
    %80 = vmatprep.subr.mxu0 0.0
    %81 = vmatpush1.msra.mxu0 0.0
    %82 = vmatprep.subr.mxu0 0.0
    %83 = vmatpush1.msra.mxu0 0.0
    %84 = vmatprep.subr.mxu0 0.0
    %85 = vmatpush1.msra.mxu0 0.0
    %86 = vmatprep.subr.mxu0 0.0
    %87 = vmatpush1.msra.mxu0 0.0
    %88 = vmatprep.subr.mxu0 0.0
    %89 = vmatpush1.msra.mxu0 0.0
    %90 = vmatprep.subr.mxu0 0.0
    %91 = vmatpush1.msra.mxu0 0.0
    %92 = vmatprep.subr.mxu0 0.0
    %93 = vmatpush1.msra.mxu0 0.0
    %94 = vmatprep.subr.mxu0 0.0
    %95 = vmatpush1.msra.mxu0 0.0
    %96 = vmatprep.subr.mxu0 0.0
    %97 = vmatpush1.msra.mxu0 0.0
    %98 = vmatprep.subr.mxu0 0.0
    %99 = vmatpush1.msra.mxu0 0.0
    %100 = vmatprep.subr.mxu0 0.0
    %101 = vmatpush1.msra.mxu0 0.0
    %102 = vmatprep.subr.mxu0 0.0
    %103 = vmatpush1.msra.mxu0 0.0
    %104 = vmatprep.subr.mxu0 0.0
    %105 = vmatpush1.msra.mxu0 0.0
    %106 = vmatprep.subr.mxu0 0.0
    %107 = vmatpush1.msra.mxu0 0.0
    %108 = vmatprep.subr.mxu0 0.0
    %109 = vmatpush1.msra.mxu0 0.0
    %110 = vmatprep.subr.mxu0 0.0
    %111 = vmatpush1.msra.mxu0 0.0
    %112 = vmatprep.subr.mxu0 0.0
    %113 = vmatpush1.msra.mxu0 0.0
    %114 = vmatprep.subr.mxu0 0.0
    %115 = vmatpush1.msra.mxu0 0.0
    %116 = vmatprep.subr.mxu0 0.0
    %117 = vmatpush1.msra.mxu0 0.0
    %118 = vmatprep.subr.mxu0 0.0
    %119 = vmatpush1.msra.mxu0 0.0
    %120 = vmatprep.subr.mxu0 0.0
    %121 = vmatpush1.msra.mxu0 0.0
    %122 = vmatprep.subr.mxu0 0.0
    %123 = vmatpush1.msra.mxu0 0.0
    %124 = vmatprep.subr.mxu0 0.0
    %125 = vmatpush1.msra.mxu0 0.0
    %126 = vmatprep.subr.mxu0 0.0
    %127 = vmatpush1.msra.mxu0 0.0
    %128 = vmatprep.subr.mxu0 0.0
    %129 = vmatpush1.msra.mxu0 0.0
    %130 = vmatprep.subr.mxu0 0.0
    %131 = vmatpush1.msra.mxu0 0.0
    %132 = vmatprep.subr.mxu0 0.0
    %133 = vmatpush1.msra.mxu0 0.0
    %134 = vmatprep.subr.mxu0 0.0
    %135 = vmatpush1.msra.mxu0 0.0
    %136 = vmatprep.subr.mxu0 0.0
    %137 = vmatpush1.msra.mxu0 0.0
    %138 = vmatprep.subr.mxu0 0.0
    %139 = vmatpush1.msra.mxu0 0.0
    %140 = vmatprep.mubr.f32.mxu0 0.0
    %141 = vmatmul.mubr.f32.gmra.mrb[0].mxu0 %v71
    %v142 = vpop.f32.mrb[0].mxu0
    %v143 = vadd.f32 0.0, %v142
    %v144 = vpop.f32.mrb[0].mxu0
    %145 = vdwg.mxu0
    %vm146 = vcmask 58368
    %v147 = vsel %vm146, %v143, 0.0
    %v148 = vrot.slane %v147, 4
    %v149 = vadd.f32 %v147, %v148
    %v150 = vrot.slane %v149, 2
    %v151 = vadd.f32 %v149, %v150
    %v152 = vrot.slane %v151, 1
    %v153 = vadd.f32 %v151, %v152
    %v154 = vrcp.pop 2.0
    %v155 = vmul.f32 %v153, %v154
    %v156 = vsub.f32 %v143, %v155
    %v157 = vmul.f32 %v156, %v156
    %v158 = vsel %vm146, %v157, 0.0
    %v159 = vrot.slane %v158, 4
    %v160 = vadd.f32 %v158, %v159
    %v161 = vrot.slane %v160, 2
    %v162 = vadd.f32 %v160, %v161
    %v163 = vrot.slane %v162, 1
    %v164 = vadd.f32 %v162, %v163
    %v165 = vmul.f32 %v164, %v154
    %v166 = vadd.f32 %v165, 1e-05
    %v167 = vrsqrt.pop %v166
    %v168 = vmul.f32 %v156, %v167
    %v169 = vmax.f32 %v168, 0.0
    %v170 = vld [vmem:[%s2] sm:$0xff]
    %v171 = vld [vmem:[%s3] sm:$0x1]
    %v173 = vlaneseq
    %v174 = vshrl.u32 %v173, 7
    %v175 = vsub.s32 0, %v174
    %v176 = vrot.slane %v171, %v175
    %vm178 = vcmask 64512
    %v180 = vsel %vm178, %v169, 0
    %182 = vmatprep.subr.mxu0 0.0
    %183 = vmatpush1.msra.mxu0 %v170
    %184 = vmatprep.subr.mxu0 0.0
    %185 = vmatpush1.msra.mxu0 0.0
    %186 = vmatprep.subr.mxu0 0.0
    %187 = vmatpush1.msra.mxu0 0.0
    %188 = vmatprep.subr.mxu0 0.0
    %189 = vmatpush1.msra.mxu0 0.0
    %190 = vmatprep.subr.mxu0 0.0
    %191 = vmatpush1.msra.mxu0 0.0
    %192 = vmatprep.subr.mxu0 0.0
    %193 = vmatpush1.msra.mxu0 0.0
    %194 = vmatprep.subr.mxu0 0.0
    %195 = vmatpush1.msra.mxu0 0.0
    %196 = vmatprep.subr.mxu0 0.0
    %197 = vmatpush1.msra.mxu0 0.0
    %198 = vmatprep.subr.mxu0 0.0
    %199 = vmatpush1.msra.mxu0 0.0
    %200 = vmatprep.subr.mxu0 0.0
    %201 = vmatpush1.msra.mxu0 0.0
    %202 = vmatprep.subr.mxu0 0.0
    %203 = vmatpush1.msra.mxu0 0.0
    %204 = vmatprep.subr.mxu0 0.0
    %205 = vmatpush1.msra.mxu0 0.0
    %206 = vmatprep.subr.mxu0 0.0
    %207 = vmatpush1.msra.mxu0 0.0
    %208 = vmatprep.subr.mxu0 0.0
    %209 = vmatpush1.msra.mxu0 0.0
    %210 = vmatprep.subr.mxu0 0.0
    %211 = vmatpush1.msra.mxu0 0.0
    %212 = vmatprep.subr.mxu0 0.0
    %213 = vmatpush1.msra.mxu0 0.0
    %214 = vmatprep.subr.mxu0 0.0
    %215 = vmatpush1.msra.mxu0 0.0
    %216 = vmatprep.subr.mxu0 0.0
    %217 = vmatpush1.msra.mxu0 0.0
    %218 = vmatprep.subr.mxu0 0.0
    %219 = vmatpush1.msra.mxu0 0.0
    %220 = vmatprep.subr.mxu0 0.0
    %221 = vmatpush1.msra.mxu0 0.0
    %222 = vmatprep.subr.mxu0 0.0
    %223 = vmatpush1.msra.mxu0 0.0
    %224 = vmatprep.subr.mxu0 0.0
    %225 = vmatpush1.msra.mxu0 0.0
    %226 = vmatprep.subr.mxu0 0.0
    %227 = vmatpush1.msra.mxu0 0.0
    %228 = vmatprep.subr.mxu0 0.0
    %229 = vmatpush1.msra.mxu0 0.0
    %230 = vmatprep.subr.mxu0 0.0
    %231 = vmatpush1.msra.mxu0 0.0
    %232 = vmatprep.subr.mxu0 0.0
    %233 = vmatpush1.msra.mxu0 0.0
    %234 = vmatprep.subr.mxu0 0.0
    %235 = vmatpush1.msra.mxu0 0.0
    %236 = vmatprep.subr.mxu0 0.0
    %237 = vmatpush1.msra.mxu0 0.0
    %238 = vmatprep.subr.mxu0 0.0
    %239 = vmatpush1.msra.mxu0 0.0
    %240 = vmatprep.subr.mxu0 0.0
    %241 = vmatpush1.msra.mxu0 0.0
    %242 = vmatprep.subr.mxu0 0.0
    %243 = vmatpush1.msra.mxu0 0.0
    %244 = vmatprep.subr.mxu0 0.0
    %245 = vmatpush1.msra.mxu0 0.0
    %246 = vmatprep.mubr.f32.mxu0 0.0
    %247 = vmatmul.mubr.f32.gmra.mrb[0].mxu0 %v180
    %v248 = vpop.f32.mrb[0].mxu0
    %v249 = vadd.f32 %v176, %v248
    %v250 = vpop.f32.mrb[0].mxu0
    %251 = vdwg.mxu0
    %vm252 = vcmask 91136
    %v253 = vsel %vm252, %v249, 0.0
    %v254 = vrot.slane %v253, 4
    %v255 = vadd.f32 %v253, %v254
    %v256 = vrot.slane %v255, 2
    %v257 = vadd.f32 %v255, %v256
    %v258 = vrot.slane %v257, 1
    %v259 = vadd.f32 %v257, %v258
    %v260 = vmul.f32 %v259, %v154
    %v261 = vsub.f32 %v249, %v260
    %v262 = vmul.f32 %v261, %v261
    %v263 = vsel %vm252, %v262, 0.0
    %v264 = vrot.slane %v263, 4
    %v265 = vadd.f32 %v263, %v264
    %v266 = vrot.slane %v265, 2
    %v267 = vadd.f32 %v265, %v266
    %v268 = vrot.slane %v267, 1
    %v269 = vadd.f32 %v267, %v268
    %v270 = vmul.f32 %v269, %v154
    %v271 = vadd.f32 %v270, 1e-05
    %v272 = vrsqrt.pop %v271
    %v273 = vmul.f32 %v261, %v272
    %v274 = vmul.f32 %v273, 0.029411765
    %vm275 = vcmp.lt.s32.totalorder %v59, 6
    %v276 = vsel %vm275, %v274, -inf
    %v277 = vsel %vm252, %v276, -inf
    %278 = vmax.xlane.f32.xlu0 %v277
    %v279 = vpop.xlane.xlu0 %278
    %v280 = vsel %vm275, -inf, %v274
    %v281 = vsel %vm252, %v280, -inf
    %282 = vmax.xlane.f32.xlu0 %v281
    %v283 = vpop.xlane.xlu0 %282
    %v284 = vsel %vm275, %v279, %v283
    %v285 = vsub.f32 %v274, %v284
    %v286 = vmul.f32 %v285, 1.442695
    %v287 = vpow.pop %v286
    %v288 = vsel %vm275, %v287, 0.0
    %v289 = vsel %vm252, %v288, 0.0
    %290 = vadd.xlane.f32.xlu0 %v289
    %v291 = vpop.xlane.xlu0 %290
    %v292 = vsel %vm275, 0.0, %v287
    %v293 = vsel %vm252, %v292, 0.0
    %294 = vadd.xlane.f32.xlu0 %v293
    %v295 = vpop.xlane.xlu0 %294
    %v296 = vsel %vm275, %v291, %v295
    %v297 = vrcp.pop %v296
    %v298 = vmul.f32 %v287, %v297
    %299 = vst.msk [vmem:[%s4] sm:$0x3] %vm252, %v298
  $region25: #{mcfg_forward.1} parent=0 // pred_fallthru
    _
  // Predicated region
  $region26: #{mcfg_forward.1} parent=0 // pred_check
    _
  $region27: #{mcfg_forward.1} parent=0 // pred_check_branch
    %301 = sbr.rel (0) target = $region29
  $region28: #{mcfg_forward.1} parent=0 // pred_region
    _
  $region29: #{mcfg_forward.1} parent=0 // pred_fallthru
    _
  // Predicated region
  $region30: #{mcfg_forward.1} parent=0 // pred_check
    _
  $region31: #{mcfg_forward.1} parent=0 // pred_check_branch
    %303 = sbr.rel (0) target = $region33
  $region32: #{mcfg_forward.1} parent=0 // pred_region
    _
  $region33: #{mcfg_forward.1} parent=0 // pred_fallthru
    _

</llo_original>
